<compile_context>
chip_gen: v7x
topology: tpu7x:2x2x1
jax: 0.10.0
libtpu: 0.0.40
codegen_flags: <defaults>
</compile_context>

<pallas_src>
import jax
import jax.numpy as jnp
from jax import lax
from jax.experimental import pallas as pl
from jax.experimental.pallas import tpu as pltpu


def _l2norm_kernel(w_ref, x_ref, o_ref):
    # x_ref: (1, C, TILE_HW) -- lanes = HW (dense), sublanes = C
    # w_ref: (C, 1) float32
    xf = x_ref[...].astype(jnp.float32)
    ssq = jnp.sum(xf * xf, axis=1, keepdims=True)       # (1, 1, TILE_HW)
    inv = lax.rsqrt(jnp.maximum(ssq, 1e-9))             # clamp(min=1e-9).rsqrt()
    w = w_ref[...].astype(jnp.float32)[None]            # (1, C, 1) broadcast
    o_ref[...] = (w * xf * inv).astype(o_ref.dtype)


def _pick_tile_hw(hw: int, c: int, itemsize: int,
                  target_bytes: int = 2 * 1024 * 1024) -> int:
    """Lane-dense tile along H*W: ~target_bytes per block, multiple of 128."""
    tile = target_bytes // max(c * itemsize, 1)
    tile = max(128, (tile // 128) * 128)
    if tile >= hw:
        return hw          # full extent: always a legal block dim
    return tile            # multiple of 128: boundary block (if any) is masked


def l2norm(x_nchw: jax.Array, weight: jax.Array, *, tile_hw: int | None = None) -> jax.Array:
    """Channel-wise L2 norm matching the PyTorch L2Norm module. x is NCHW."""
    n, c, h, w = x_nchw.shape
    hw = h * w

    # Free reshape (NCHW is contiguous): no HBM traffic, unlike a transpose.
    x3d = x_nchw.reshape(n, c, hw)
    w2d = weight.astype(jnp.float32).reshape(c, 1)   # keep weight in f32

    if tile_hw is None:
        tile_hw = _pick_tile_hw(hw, c, jnp.dtype(x_nchw.dtype).itemsize)

    grid = (n, pl.cdiv(hw, tile_hw))

    out3d = pl.pallas_call(
        _l2norm_kernel,
        out_shape=jax.ShapeDtypeStruct((n, c, hw), x_nchw.dtype),
        grid_spec=pl.GridSpec(
            grid=grid,
            in_specs=[
                pl.BlockSpec((c, 1), lambda b, i: (0, 0)),             # weight, replicated
                pl.BlockSpec((1, c, tile_hw), lambda b, i: (b, 0, i)),  # x tile
            ],
            out_specs=pl.BlockSpec((1, c, tile_hw), lambda b, i: (b, 0, i)),
        ),
        compiler_params=pltpu.CompilerParams(
            dimension_semantics=("parallel", "parallel"),
            vmem_limit_bytes=32 * 1024 * 1024,
        ),
    )(w2d, x3d)

    return out3d.reshape(n, c, h, w)


def l2norm_ref(x_nchw: jax.Array, weight: jax.Array) -> jax.Array:
    """Pure-JAX reference mirroring the PyTorch forward."""
    ssq = jnp.sum(x_nchw.astype(jnp.float32) ** 2, axis=1, keepdims=True)
    inv = lax.rsqrt(jnp.maximum(ssq, 1e-9))
    wb = weight.astype(jnp.float32).reshape(1, -1, 1, 1)
    return (wb * x_nchw.astype(jnp.float32) * inv).astype(x_nchw.dtype)


if __name__ == "__main__":
    key = jax.random.PRNGKey(0)
    kx, kw, kx2, kw2 = jax.random.split(key, 4)

    # Primary case matching the module spec: N=2, C=4, H=W=16.
    N, C, H, W = 2, 4, 16, 16
    x = jax.random.normal(kx, (N, C, H, W), dtype=jnp.float32)
    weight = jax.random.normal(kw, (C,), dtype=jnp.float32)  # nn.Parameter(torch.randn(C))

    out = jax.block_until_ready(l2norm(x, weight))
    ref = l2norm_ref(x, weight)
    assert out.shape == (N, C, H, W)
    assert jnp.allclose(out, ref, atol=1e-5, rtol=1e-5), "mismatch vs reference (case 1)"

    # Secondary case: larger C, multiple HW tiles (exercises the tiled path).
    N2, C2, H2, W2 = 2, 64, 16, 16
    x2 = jax.random.normal(kx2, (N2, C2, H2, W2), dtype=jnp.float32)
    weight2 = jax.random.normal(kw2, (C2,), dtype=jnp.float32)

    out2 = jax.block_until_ready(l2norm(x2, weight2, tile_hw=128))
    ref2 = l2norm_ref(x2, weight2)
    assert jnp.allclose(out2, ref2, atol=1e-5, rtol=1e-5), "mismatch vs reference (case 2)"

    print("KERNEL_OK")
</pallas_src>

<mosaic_0001>
module attributes {stable_mosaic.version = 11 : i64} {
  func.func @_l2norm_kernel(%arg0: i32, %arg1: i32, %arg2: memref<4x1xf32, #tpu.memory_space<vmem>>, %arg3: memref<1x4x256xf32, #tpu.memory_space<vmem>>, %arg4: memref<1x4x256xf32, #tpu.memory_space<vmem>>) attributes {dimension_semantics = [#tpu.dimension_semantics<parallel>, #tpu.dimension_semantics<parallel>], iteration_bounds = array<i64: 2, 1>, scalar_prefetch = 0 : i64, scratch_operands = 0 : i64, tpu.core_type = #tpu.core_type<tc>, window_params = [{pipeline_mode = #tpu.pipeline_mode<synchronous>, transform_indices = @transform_0, window_bounds = array<i64: 4, 1>}, {transform_indices = @transform_1, window_bounds = array<i64: 1, 4, 256>}, {transform_indices = @transform_2, window_bounds = array<i64: 1, 4, 256>}]} {
    %c0 = arith.constant 0 : index
    %c0_0 = arith.constant 0 : index
    %c0_1 = arith.constant 0 : index
    %0 = vector.load %arg3[%c0, %c0_0, %c0_1] : memref<1x4x256xf32, #tpu.memory_space<vmem>>, vector<1x4x256xf32>
    %1 = arith.mulf %0, %0 : vector<1x4x256xf32>
    %cst = arith.constant dense<0.000000e+00> : vector<1x256xf32>
    %2 = vector.multi_reduction <add>, %1, %cst [1] : vector<1x4x256xf32> to vector<1x256xf32>
    %3 = vector.shape_cast %2 : vector<1x256xf32> to vector<1x1x256xf32>
    %cst_2 = arith.constant 9.99999971E-10 : f32
    %4 = vector.broadcast %cst_2 : f32 to vector<1x1x256xf32>
    %5 = arith.maximumf %3, %4 : vector<1x1x256xf32>
    %6 = math.rsqrt %5 : vector<1x1x256xf32>
    %c0_3 = arith.constant 0 : index
    %c0_4 = arith.constant 0 : index
    %7 = vector.load %arg2[%c0_3, %c0_4] : memref<4x1xf32, #tpu.memory_space<vmem>>, vector<4x1xf32>
    %8 = vector.shape_cast %7 : vector<4x1xf32> to vector<1x4x1xf32>
    %9 = vector.broadcast %8 : vector<1x4x1xf32> to vector<1x4x256xf32>
    %10 = arith.mulf %9, %0 : vector<1x4x256xf32>
    %11 = vector.broadcast %6 : vector<1x1x256xf32> to vector<1x4x256xf32>
    %12 = arith.mulf %10, %11 : vector<1x4x256xf32>
    %c0_5 = arith.constant 0 : index
    %c0_6 = arith.constant 0 : index
    %c0_7 = arith.constant 0 : index
    %13 = vector.load %arg4[%c0_5, %c0_6, %c0_7] : memref<1x4x256xf32, #tpu.memory_space<vmem>>, vector<1x4x256xf32>
    tpu.vector_store %arg4[%c0_5, %c0_6, %c0_7], %12 {strides = array<i32>} : memref<1x4x256xf32, #tpu.memory_space<vmem>>, vector<1x4x256xf32>,
    return
  }
  func.func @transform_0(%arg0: i32, %arg1: i32) -> (i32, i32) {
    %c0_i32 = arith.constant 0 : i32
    %c0_i32_0 = arith.constant 0 : i32
    %c0_i32_1 = arith.constant 0 : i32
    return %c0_i32, %c0_i32_0 : i32, i32
  }
  func.func @transform_1(%arg0: i32, %arg1: i32) -> (i32, i32, i32) {
    %c0_i32 = arith.constant 0 : i32
    %c0_i32_0 = arith.constant 0 : i32
    return %arg0, %c0_i32, %arg1 : i32, i32, i32
  }
  func.func @transform_2(%arg0: i32, %arg1: i32) -> (i32, i32, i32) {
    %c0_i32 = arith.constant 0 : i32
    %c0_i32_0 = arith.constant 0 : i32
    return %arg0, %c0_i32, %arg1 : i32, i32, i32
  }
}

</mosaic_0001>

<llo_original>
// kernel: tpu_custom_call.1
$region0: #{tpu_custom_call.1}
  #allocation0 [shape = 'u32[]', space=smem, size = 0x4, offset = 0x4, fixed_abs, tag = 'smem constant byte address 0x4 - core index']
  #allocation1 [shape = 'u32[144,128]{1,0:T(1,128)}', space=vmem, size = 0x12000, scoped, tag = 'internal scratch']
  %s0 = inlined_call_operand.vmem [shape: f32[4,1], index: 0, kind: input, shape index: {}]
  %s1 = inlined_call_operand.hbm [shape: f32[2,4,256], index: 1, kind: input, shape index: {}]
  %s2 = inlined_call_operand.hbm [shape: f32[2,4,256], index: 2, kind: output, shape index: {}]
  %s3 = sld [smem:[#allocation0]]
  $region45: #{tpu_custom_call.1} parent=0
    _
  %s5 = ssub.s32 1, %s3
  %s6 = scalar_select 0, %s5, %s3
  $region1: #{tpu_custom_call.1} parent=0
    #allocation2 [shape = 'u8[8192]{0}', space=vmem, size = 0x2000, scoped, tag = 'input window, operand 1']
    #allocation3 [shape = 's32[2]{0}', space=sflag, size = 0x8, scoped, tag = 'scoped memory for tpu_custom_call.1']
    #allocation4 [shape = 's32[2]{0}', space=sflag, size = 0x8, scoped, tag = 'scoped memory for tpu_custom_call.1']
    #allocation5 [shape = 'u8[8192]{0}', space=vmem, size = 0x2000, scoped, tag = 'output window, operand 0']
    %7 = vsyncpa [#allocation3], 0
    %s8 = scalar_lea.sflag [#allocation3], 1
    %9 = vsyncpa %s8, 0
    %10 = vsyncpa [#allocation4], 0
    %s11 = scalar_lea.sflag [#allocation4], 1
    %12 = vsyncpa %s11, 0
    loop: start=0, step=1, limit=4
    $region2: #{tpu_custom_call.1} parent=1 // loop_pre_header
      _
    $region3: #{tpu_custom_call.1} parent=1 // loop_header
      %s14 = sphi 0, %s18
      %p15 = scmp.ge.s32.totalorder %s14, 4
      %s21 = sphi 0, %s33
      %s22 = sphi 0, %s29
      %s23 = sphi 0, %s21
      %s24 = sphi 0, %s22
      %s25 = sphi 0, %s23
      %s26 = sphi 0, %s24
      %s34 = sphi 0, %s34
      %s36 = sphi 0, %s34
      %s37 = sphi 0, %s36
      %s51 = sphi 0, %s37
      %s59 = sphi 0, %s61
      %s62 = sphi 0, %s59
      %s63 = sphi 0, %s62
      %s79 = sphi 0, %s63
      %s87 = sphi 0, %s89
      %s90 = sphi 0, %s87
      %s91 = sphi 0, %s90
      %s107 = sphi 0, %s91
    $region4: #{tpu_custom_call.1} parent=1 // loop_header_branch
      %17 = sbr.rel (%p15) target = $region8
    $region5: #{tpu_custom_call.1} parent=1 // loop_body
      %s19 = ssub.s32 %s14, 1
      %s20 = ssub.s32 %s14, 2
      %s27 = sadd.s32 1, %s22
      %p28 = scmp.ge.s32.totalorder %s27, 1
      %s29 = scalar_select %p28, 0, %s27
      %s30 = sadd.s32 1, %s21
      %s31 = scalar_select %p28, %s30, %s21
      %p32 = scmp.ge.s32.totalorder %s31, 2
      %s33 = scalar_select %p32, 0, %s31
      %s35 = sadd.s32 %s34, 1
      %p38 = scmp.eq.s32.totalorder %s14, 1
      %p39 = scmp.ne.s32.totalorder %s34, %s36
      %p40 = scmp.eq.s32.totalorder %s14, 0
      %p41 = por %p39, %p40
      %p42 = scmp.ne.s32.totalorder %s34, %s36
      %p43 = scmp.eq.s32.totalorder %s19, 1
      %p44 = por %p42, %p43
      %p45 = scmp.ne.s32.totalorder %s36, %s37
      %p46 = scmp.eq.s32.totalorder %s19, 0
      %p47 = por %p45, %p46
      %p48 = scmp.ne.s32.totalorder %s36, %s37
      %p49 = scmp.eq.s32.totalorder %s20, 1
      %p50 = por %p48, %p49
      %p52 = scmp.ne.s32.totalorder %s37, %s51
      %p53 = scmp.eq.s32.totalorder %s20, 0
      %p54 = por %p52, %p53
      %s55 = ssub.s32 %s21, %s33
      %s56 = ssub.s32 %s22, %s29
      %s57 = sor.u32 %s55, %s56
      %p58 = scmp.eq.s32.totalorder %s57, 0
      %s60 = sadd.s32 %s59, 1
      %s61 = scalar_select %p58, %s59, %s60
      %p64 = pneg %p58
      %p65 = scmp.eq.s32.totalorder %s14, 1
      %p66 = por %p64, %p65
      %p67 = scmp.ne.s32.totalorder %s59, %s62
      %p68 = scmp.eq.s32.totalorder %s14, 0
      %p69 = por %p67, %p68
      %p70 = scmp.ne.s32.totalorder %s59, %s62
      %p71 = scmp.eq.s32.totalorder %s19, 1
      %p72 = por %p70, %p71
      %p73 = scmp.ne.s32.totalorder %s62, %s63
      %p74 = scmp.eq.s32.totalorder %s19, 0
      %p75 = por %p73, %p74
      %p76 = scmp.ne.s32.totalorder %s62, %s63
      %p77 = scmp.eq.s32.totalorder %s20, 1
      %p78 = por %p76, %p77
      %p80 = scmp.ne.s32.totalorder %s63, %s79
      %p81 = scmp.eq.s32.totalorder %s20, 0
      %p82 = por %p80, %p81
      %s83 = ssub.s32 %s21, %s33
      %s84 = ssub.s32 %s22, %s29
      %s85 = sor.u32 %s83, %s84
      %p86 = scmp.eq.s32.totalorder %s85, 0
      %s88 = sadd.s32 %s87, 1
      %s89 = scalar_select %p86, %s87, %s88
      %p92 = pneg %p86
      %p93 = scmp.eq.s32.totalorder %s14, 1
      %p94 = por %p92, %p93
      %p95 = scmp.ne.s32.totalorder %s87, %s90
      %p96 = scmp.eq.s32.totalorder %s14, 0
      %p97 = por %p95, %p96
      %p98 = scmp.ne.s32.totalorder %s87, %s90
      %p99 = scmp.eq.s32.totalorder %s19, 1
      %p100 = por %p98, %p99
      %p101 = scmp.ne.s32.totalorder %s90, %s91
      %p102 = scmp.eq.s32.totalorder %s19, 0
      %p103 = por %p101, %p102
      %p104 = scmp.ne.s32.totalorder %s90, %s91
      %p105 = scmp.eq.s32.totalorder %s20, 1
      %p106 = por %p104, %p105
      %p108 = scmp.ne.s32.totalorder %s91, %s107
      %p109 = scmp.eq.s32.totalorder %s20, 0
      %p110 = por %p108, %p109
      %p111 = scmp.le.s32.totalorder 1, %s14
      %p112 = scmp.lt.s32.totalorder %s14, 3
      %p113 = pnand %p111, %p112
      %p114 = pneg %p113
      // Predicated region
      $region9: #{tpu_custom_call.1} parent=5 // pred_check
        _
      $region10: #{tpu_custom_call.1} parent=5 // pred_check_branch
        %116 = sbr.rel (%p113) target = $region12
      $region11: #{tpu_custom_call.1} parent=5 // pred_region
        %s117 = ssub.s32 %s14, 1
        // Predicated region
        $region13: #{tpu_custom_call.1} parent=11 // pred_check
          %p118 = pneg %p47
        $region14: #{tpu_custom_call.1} parent=11 // pred_check_branch
          %120 = sbr.rel (%p118) target = $region16
        $region15: #{tpu_custom_call.1} parent=11 // pred_region
          _
        $region16: #{tpu_custom_call.1} parent=11 // pred_fallthru
          _
      $region12: #{tpu_custom_call.1} parent=5 // pred_fallthru
        _
      %p121 = scmp.lt.s32.totalorder %s14, 2
      // Predicated region
      $region17: #{tpu_custom_call.1} parent=5 // pred_check
        %p122 = pneg %p121
      $region18: #{tpu_custom_call.1} parent=5 // pred_check_branch
        %124 = sbr.rel (%p122) target = $region20
      $region19: #{tpu_custom_call.1} parent=5 // pred_region
        // Predicated region
        $region21: #{tpu_custom_call.1} parent=19 // pred_check
          %p125 = pneg %p69
        $region22: #{tpu_custom_call.1} parent=19 // pred_check_branch
          %127 = sbr.rel (%p125) target = $region24
        $region23: #{tpu_custom_call.1} parent=19 // pred_region
          %s128 = sand.u32 %s59, 1
          %s129 = scalar_lea.sflag [#allocation3], %s128
          %s130 = sand.u32 %s59, 1
          %s131 = smul.addr %s130, 8
          %s132 = scalar_lea.vmem [#allocation2], %s131
          %s133 = smul.u32 2, %s22
          %s135 = ssub.s32 128, 128
          %136 = vsyncadd %s129, %s135
          %s137 = smul.addr %s21, 2
          %s138 = sadd.s32 %s133, %s137
          %s139 = smul.addr %s138, 64
          %s140 = scalar_lea.hbm %s1, %s139
          %s142 = sshll.u32 %s132, 4
          %s143 = int_to_ptr.vmem [resolvable:$true] %s142
          %145 = dma.hbm_to_vmem [thread:$0]  %s140, 128, %s143, %s129
        $region24: #{tpu_custom_call.1} parent=19 // pred_fallthru
          _
      $region20: #{tpu_custom_call.1} parent=5 // pred_fallthru
        _
      %p146 = scmp.le.s32.totalorder 1, %s14
      %p147 = scmp.lt.s32.totalorder %s14, 3
      %p148 = pnand %p146, %p147
      %p149 = pneg %p148
      // Predicated region
      $region25: #{tpu_custom_call.1} parent=5 // pred_check
        _
      $region26: #{tpu_custom_call.1} parent=5 // pred_check_branch
        %151 = sbr.rel (%p148) target = $region28
      $region27: #{tpu_custom_call.1} parent=5 // pred_region
        %s152 = ssub.s32 %s14, 1
        %s153 = sand.u32 %s62, 1
        %s154 = scalar_lea.sflag [#allocation3], %s153
        %s155 = sand.u32 %s62, 1
        %s156 = smul.addr %s155, 8
        %s157 = scalar_lea.vmem [#allocation2], %s156
        // Predicated region
        $region29: #{tpu_custom_call.1} parent=27 // pred_check
          %p158 = pneg %p75
        $region30: #{tpu_custom_call.1} parent=27 // pred_check_branch
          %160 = sbr.rel (%p158) target = $region32
        $region31: #{tpu_custom_call.1} parent=27 // pred_region
          %161 = dma.done %s154, 128
        $region32: #{tpu_custom_call.1} parent=27 // pred_fallthru
          _
        %p162 = pneg %p47
        %p163 = pneg %p44
        %s164 = sand.u32 %s62, 1
        %s165 = scalar_lea.sflag [#allocation3], %s164
        %s166 = sand.u32 %s62, 1
        %s167 = smul.addr %s166, 8
        %s168 = scalar_lea.vmem [#allocation2], %s167
        %p169 = pneg %p75
        %p170 = pneg %p72
        %p171 = pneg %p103
        %p172 = pneg %p100
        %s173 = sand.u32 %s90, 1
        %s174 = scalar_lea.sflag [#allocation4], %s173
        %s175 = sand.u32 %s90, 1
        %s176 = smul.addr %s175, 8
        %s177 = scalar_lea.vmem [#allocation5], %s176
        %s178 = smul.u32 2, %s24
        %s179 = smul.u32 2, %s24
        %v180 = vld [vmem:[%s157] sm:$0xff]
        %v181 = vmul.f32 %v180, %v180
        %v183 = vcombine.high %v181, %v181
        %vm185 = vcmask 1043456
        %v186 = vsel %vm185, %v181, 0.0
        %v187 = vrot.slane %v186, 4
        %v188 = vadd.f32 %v186, %v187
        %v189 = vrot.slane %v188, 2
        %v190 = vadd.f32 %v188, %v189
        %v191 = vrot.slane %v190, 1
        %v192 = vadd.f32 %v190, %v191
        %v193 = vsel %vm185, %v183, 0.0
        %v194 = vrot.slane %v193, 4
        %v195 = vadd.f32 %v193, %v194
        %v196 = vrot.slane %v195, 2
        %v197 = vadd.f32 %v195, %v196
        %v198 = vrot.slane %v197, 1
        %v199 = vadd.f32 %v197, %v198
        %v200 = vmax.f32 %v192, 1e-09
        %v201 = vmax.f32 %v199, 1e-09
        %v202 = vrsqrt.pop %v200
        %v203 = vrsqrt.pop %v201
        %v204 = vld [vmem:[%s0] sm:$0xf]
        %206 = vset.pattern.permute.xlu0 0
        %207 = vperm.xlu0 %206, %v204
        %v208 = vpop.permute.xlu0 %207
        %v211 = vcombine.high %v180, %v180
        %v213 = vmul.f32 %v208, %v180
        %v214 = vmul.f32 %v208, %v211
        %v215 = vmul.f32 %v213, %v202
        %v216 = vmul.f32 %v214, %v203
        %v219 = vcombine.low %v215, %v216
        %221 = vst [vmem:[%s177] sm:$0xff] %v219
        %s222 = sand.u32 %s90, 1
        %s223 = scalar_lea.sflag [#allocation4], %s222
        %s224 = sand.u32 %s90, 1
        %s225 = smul.addr %s224, 8
        %s226 = scalar_lea.vmem [#allocation5], %s225
        // Predicated region
        $region33: #{tpu_custom_call.1} parent=27 // pred_check
          %p227 = pneg %p100
        $region34: #{tpu_custom_call.1} parent=27 // pred_check_branch
          %229 = sbr.rel (%p227) target = $region36
        $region35: #{tpu_custom_call.1} parent=27 // pred_region
          %s230 = smul.u32 2, %s24
          %s232 = ssub.s32 128, 128
          %233 = vsyncadd %s223, %s232
          %s234 = smul.addr %s23, 2
          %s235 = sadd.s32 %s230, %s234
          %s236 = smul.addr %s235, 64
          %s237 = scalar_lea.hbm %s2, %s236
          %s239 = sshll.u32 %s226, 4
          %s240 = int_to_ptr.vmem [resolvable:$true] %s239
          %242 = dma.vmem_to_hbm [thread:$0]  %s240, 128, %s237, %s223
        $region36: #{tpu_custom_call.1} parent=27 // pred_fallthru
          _
      $region28: #{tpu_custom_call.1} parent=5 // pred_fallthru
        _
      %p243 = scmp.le.s32.totalorder 2, %s14
      // Predicated region
      $region37: #{tpu_custom_call.1} parent=5 // pred_check
        %p244 = pneg %p243
      $region38: #{tpu_custom_call.1} parent=5 // pred_check_branch
        %246 = sbr.rel (%p244) target = $region40
      $region39: #{tpu_custom_call.1} parent=5 // pred_region
        %s247 = ssub.s32 %s14, 2
        // Predicated region
        $region41: #{tpu_custom_call.1} parent=39 // pred_check
          %p248 = pneg %p106
        $region42: #{tpu_custom_call.1} parent=39 // pred_check_branch
          %250 = sbr.rel (%p248) target = $region44
        $region43: #{tpu_custom_call.1} parent=39 // pred_region
          %s251 = sand.u32 %s91, 1
          %s252 = scalar_lea.sflag [#allocation4], %s251
          %s253 = sand.u32 %s91, 1
          %s254 = smul.addr %s253, 8
          %s255 = scalar_lea.vmem [#allocation5], %s254
          %256 = dma.done %s252, 128
        $region44: #{tpu_custom_call.1} parent=39 // pred_fallthru
          _
      $region40: #{tpu_custom_call.1} parent=5 // pred_fallthru
        _
    $region6: #{tpu_custom_call.1} parent=1 // loop_footer
      %s18 = sadd.s32 1, %s14
    $region7: #{tpu_custom_call.1} parent=1 // loop_footer_branch
      %13 = sbr.rel target = $region3
    $region8: #{tpu_custom_call.1} parent=1 // loop_exit
      _
    %257 = vsyncpa [#allocation3], 1
    %s258 = scalar_lea.sflag [#allocation3], 1
    %259 = vsyncpa %s258, 1
    %260 = vsyncpa [#allocation4], 1
    %s261 = scalar_lea.sflag [#allocation4], 1
    %262 = vsyncpa %s261, 1

</llo_original>
